<compile_context>
chip_gen: v7x
topology: tpu7x:2x2x1
jax: 0.10.0
libtpu: 0.0.40
codegen_flags: <defaults>
</compile_context>

<pallas_src>
import functools

import jax
import jax.numpy as jnp
from jax.experimental import pallas as pl
from jax.experimental.pallas import tpu as pltpu

SMOOTH = 1e-05
LANES = 128
MAX_BLOCK_ROWS = 4096   # (4096, 128) f32 tile = 2 MiB per input per grid step.


def _dice_kernel(pred_ref, true_ref, out_ref, tp_ref, sp_ref, st_ref,
                 *, block_rows, n_valid_last):
    i = pl.program_id(0)
    last = pl.num_programs(0) - 1
    block_elems = block_rows * LANES

    @pl.when(i == 0)
    def _init():
        tp_ref[...] = jnp.zeros_like(tp_ref)
        sp_ref[...] = jnp.zeros_like(sp_ref)
        st_ref[...] = jnp.zeros_like(st_ref)

    def accumulate(valid_count):
        x = pred_ref[...].astype(jnp.float32)
        t = true_ref[...].astype(jnp.float32)
        # sigmoid(x) = 0.5 * tanh(0.5 * x) + 0.5  (single EUP transcendental)
        p = 0.5 * jnp.tanh(0.5 * x) + 0.5
        if valid_count is not None:
            rows = jax.lax.broadcasted_iota(jnp.int32, (block_rows, LANES), 0)
            lanes = jax.lax.broadcasted_iota(jnp.int32, (block_rows, LANES), 1)
            valid = rows * LANES + lanes < valid_count
            p = jnp.where(valid, p, 0.0)
            t = jnp.where(valid, t, 0.0)

        def fold(v):  # (block_rows, 128) -> (8, 128) via pure vreg adds (VPU)
            return jnp.sum(v.reshape(block_rows // 8, 8, LANES), axis=0)

        tp_ref[...] = tp_ref[...] + fold(p * t)   # intersection partials
        sp_ref[...] = sp_ref[...] + fold(p)       # sum(sigmoid(pred)) partials
        st_ref[...] = st_ref[...] + fold(t)       # sum(true) partials

    if n_valid_last < block_elems:
        # Only the last grid block needs masking; keep the bulk path lean.
        @pl.when(i < last)
        def _bulk():
            accumulate(None)

        @pl.when(i == last)
        def _tail():
            accumulate(n_valid_last)
    else:
        accumulate(None)

    @pl.when(i == last)
    def _finalize():
        inter = jnp.sum(tp_ref[...])
        sum_p = jnp.sum(sp_ref[...])
        sum_t = jnp.sum(st_ref[...])
        out_ref[0] = 1.0 - (2.0 * inter + SMOOTH) / (sum_p + sum_t + SMOOTH)


def dice_loss(y_pred, y_true):
    """Pallas TPU implementation of DiceLoss.forward(y_pred, y_true)."""
    pred_flat = jnp.reshape(y_pred, (-1,))   # native dtype, no upcast copy
    true_flat = jnp.reshape(y_true, (-1,))
    n = pred_flat.shape[0]

    # View as (n_rows, 128).  Pad only when strictly required:
    #  * to a multiple of 128 lanes (<= 127 elements), and
    #  * to a multiple of 8 rows in the tiny single-block case.
    # Large inputs with n % 128 == 0 (the common case) are never copied; the
    # ragged last grid block is masked inside the kernel instead.
    n_rows = pl.cdiv(n, LANES)
    if n_rows <= MAX_BLOCK_ROWS:
        block_rows = ((n_rows + 7) // 8) * 8
        padded_rows = block_rows
    else:
        block_rows = MAX_BLOCK_ROWS
        padded_rows = n_rows
    padded_n = padded_rows * LANES
    if padded_n != n:
        pad = padded_n - n
        pred_flat = jnp.pad(pred_flat, (0, pad))
        true_flat = jnp.pad(true_flat, (0, pad))
    pred_2d = pred_flat.reshape(padded_rows, LANES)
    true_2d = true_flat.reshape(padded_rows, LANES)

    n_blocks = pl.cdiv(padded_rows, block_rows)
    n_valid_last = n - (n_blocks - 1) * block_rows * LANES  # static Python int

    kernel = functools.partial(
        _dice_kernel, block_rows=block_rows, n_valid_last=n_valid_last)

    out = pl.pallas_call(
        kernel,
        out_shape=jax.ShapeDtypeStruct((1,), jnp.float32),
        grid_spec=pltpu.PrefetchScalarGridSpec(
            num_scalar_prefetch=0,
            grid=(n_blocks,),
            in_specs=[
                pl.BlockSpec((block_rows, LANES), lambda i: (i, 0)),
                pl.BlockSpec((block_rows, LANES), lambda i: (i, 0)),
            ],
            out_specs=pl.BlockSpec(memory_space=pltpu.SMEM),
            scratch_shapes=[
                pltpu.VMEM((8, LANES), jnp.float32),  # intersection partials
                pltpu.VMEM((8, LANES), jnp.float32),  # sum(sigmoid(pred))
                pltpu.VMEM((8, LANES), jnp.float32),  # sum(true)
            ],
        ),
        compiler_params=pltpu.CompilerParams(
            dimension_semantics=("arbitrary",)),
    )(pred_2d, true_2d)
    return out[0]


def _reference(y_pred, y_true):
    p = jax.nn.sigmoid(y_pred.astype(jnp.float32)).reshape(-1)
    t = y_true.astype(jnp.float32).reshape(-1)
    inter = jnp.sum(p * t)
    return 1.0 - (2.0 * inter + SMOOTH) / (jnp.sum(p) + jnp.sum(t) + SMOOTH)


if __name__ == "__main__":
    key = jax.random.PRNGKey(0)
    k1, k2 = jax.random.split(key)
    # NCHW logits and binary ground-truth mask.
    y_pred = jax.random.normal(k1, (2, 4, 16, 16), dtype=jnp.float32)
    y_true = (jax.random.uniform(k2, (2, 4, 16, 16)) > 0.5).astype(jnp.float32)

    loss = jax.block_until_ready(dice_loss(y_pred, y_true))
    ref = _reference(y_pred, y_true)
    assert jnp.allclose(loss, ref, rtol=1e-5, atol=1e-5), (loss, ref)

    # Ragged shape (210 elements, not a multiple of 128) exercises the
    # in-kernel tail mask path.
    k3, k4 = jax.random.split(k1)
    y_pred2 = jax.random.normal(k3, (2, 3, 5, 7), dtype=jnp.float32)
    y_true2 = (jax.random.uniform(k4, (2, 3, 5, 7)) > 0.5).astype(jnp.float32)
    loss2 = jax.block_until_ready(dice_loss(y_pred2, y_true2))
    ref2 = _reference(y_pred2, y_true2)
    assert jnp.allclose(loss2, ref2, rtol=1e-5, atol=1e-5), (loss2, ref2)

    print("KERNEL_OK")
</pallas_src>

<mosaic_0001>
module attributes {stable_mosaic.version = 11 : i64} {
  func.func @_dice_kernel(%arg0: i32, %arg1: memref<16x128xf32, #tpu.memory_space<vmem>>, %arg2: memref<16x128xf32, #tpu.memory_space<vmem>>, %arg3: memref<1xf32, #tpu.memory_space<smem>>, %arg4: memref<8x128xf32, #tpu.memory_space<vmem>>, %arg5: memref<8x128xf32, #tpu.memory_space<vmem>>, %arg6: memref<8x128xf32, #tpu.memory_space<vmem>>) attributes {dimension_semantics = [#tpu.dimension_semantics<arbitrary>], iteration_bounds = array<i64: 1>, scalar_prefetch = 0 : i64, scratch_operands = 3 : i64, tpu.core_type = #tpu.core_type<tc>, window_params = [{transform_indices = @transform_0, window_bounds = array<i64: 16, 128>}, {transform_indices = @transform_1, window_bounds = array<i64: 16, 128>}, {transform_indices = @transform_2, window_bounds = array<i64: 1>}]} {
    %c0_i32 = arith.constant 0 : i32
    %0 = arith.cmpi eq, %arg0, %c0_i32 : i32
    %1 = arith.extui %0 : i1 to i32
    %c0_i32_0 = arith.constant 0 : i32
    %2 = arith.cmpi ne, %1, %c0_i32_0 : i32
    scf.if %2 {
      %cst_23 = arith.constant 0.000000e+00 : f32
      %31 = vector.broadcast %cst_23 : f32 to vector<8x128xf32>
      %c0_24 = arith.constant 0 : index
      %c0_25 = arith.constant 0 : index
      %32 = vector.load %arg4[%c0_24, %c0_25] : memref<8x128xf32, #tpu.memory_space<vmem>>, vector<8x128xf32>
      tpu.vector_store %arg4[%c0_24, %c0_25], %31 {strides = array<i32>} : memref<8x128xf32, #tpu.memory_space<vmem>>, vector<8x128xf32>,
      %cst_26 = arith.constant 0.000000e+00 : f32
      %33 = vector.broadcast %cst_26 : f32 to vector<8x128xf32>
      %c0_27 = arith.constant 0 : index
      %c0_28 = arith.constant 0 : index
      %34 = vector.load %arg5[%c0_27, %c0_28] : memref<8x128xf32, #tpu.memory_space<vmem>>, vector<8x128xf32>
      tpu.vector_store %arg5[%c0_27, %c0_28], %33 {strides = array<i32>} : memref<8x128xf32, #tpu.memory_space<vmem>>, vector<8x128xf32>,
      %cst_29 = arith.constant 0.000000e+00 : f32
      %35 = vector.broadcast %cst_29 : f32 to vector<8x128xf32>
      %c0_30 = arith.constant 0 : index
      %c0_31 = arith.constant 0 : index
      %36 = vector.load %arg6[%c0_30, %c0_31] : memref<8x128xf32, #tpu.memory_space<vmem>>, vector<8x128xf32>
      tpu.vector_store %arg6[%c0_30, %c0_31], %35 {strides = array<i32>} : memref<8x128xf32, #tpu.memory_space<vmem>>, vector<8x128xf32>,
    } else {
    }
    %c0 = arith.constant 0 : index
    %c0_1 = arith.constant 0 : index
    %3 = vector.load %arg1[%c0, %c0_1] : memref<16x128xf32, #tpu.memory_space<vmem>>, vector<16x128xf32>
    %c0_2 = arith.constant 0 : index
    %c0_3 = arith.constant 0 : index
    %4 = vector.load %arg2[%c0_2, %c0_3] : memref<16x128xf32, #tpu.memory_space<vmem>>, vector<16x128xf32>
    %cst = arith.constant 5.000000e-01 : f32
    %5 = vector.broadcast %cst : f32 to vector<16x128xf32>
    %6 = arith.mulf %5, %3 : vector<16x128xf32>
    %7 = math.tanh %6 : vector<16x128xf32>
    %cst_4 = arith.constant 5.000000e-01 : f32
    %8 = vector.broadcast %cst_4 : f32 to vector<16x128xf32>
    %9 = arith.mulf %8, %7 : vector<16x128xf32>
    %cst_5 = arith.constant 5.000000e-01 : f32
    %10 = vector.broadcast %cst_5 : f32 to vector<16x128xf32>
    %11 = arith.addf %9, %10 : vector<16x128xf32>
    %c0_6 = arith.constant 0 : index
    %c0_7 = arith.constant 0 : index
    %12 = vector.load %arg4[%c0_6, %c0_7] : memref<8x128xf32, #tpu.memory_space<vmem>>, vector<8x128xf32>
    %13 = arith.mulf %11, %4 : vector<16x128xf32>
    %14 = vector.shape_cast %13 : vector<16x128xf32> to vector<2x8x128xf32>
    %cst_8 = arith.constant dense<0.000000e+00> : vector<8x128xf32>
    %15 = vector.multi_reduction <add>, %14, %cst_8 [0] : vector<2x8x128xf32> to vector<8x128xf32>
    %16 = arith.addf %12, %15 : vector<8x128xf32>
    %c0_9 = arith.constant 0 : index
    %c0_10 = arith.constant 0 : index
    %17 = vector.load %arg4[%c0_9, %c0_10] : memref<8x128xf32, #tpu.memory_space<vmem>>, vector<8x128xf32>
    tpu.vector_store %arg4[%c0_9, %c0_10], %16 {strides = array<i32>} : memref<8x128xf32, #tpu.memory_space<vmem>>, vector<8x128xf32>,
    %c0_11 = arith.constant 0 : index
    %c0_12 = arith.constant 0 : index
    %18 = vector.load %arg5[%c0_11, %c0_12] : memref<8x128xf32, #tpu.memory_space<vmem>>, vector<8x128xf32>
    %19 = vector.shape_cast %11 : vector<16x128xf32> to vector<2x8x128xf32>
    %cst_13 = arith.constant dense<0.000000e+00> : vector<8x128xf32>
    %20 = vector.multi_reduction <add>, %19, %cst_13 [0] : vector<2x8x128xf32> to vector<8x128xf32>
    %21 = arith.addf %18, %20 : vector<8x128xf32>
    %c0_14 = arith.constant 0 : index
    %c0_15 = arith.constant 0 : index
    %22 = vector.load %arg5[%c0_14, %c0_15] : memref<8x128xf32, #tpu.memory_space<vmem>>, vector<8x128xf32>
    tpu.vector_store %arg5[%c0_14, %c0_15], %21 {strides = array<i32>} : memref<8x128xf32, #tpu.memory_space<vmem>>, vector<8x128xf32>,
    %c0_16 = arith.constant 0 : index
    %c0_17 = arith.constant 0 : index
    %23 = vector.load %arg6[%c0_16, %c0_17] : memref<8x128xf32, #tpu.memory_space<vmem>>, vector<8x128xf32>
    %24 = vector.shape_cast %4 : vector<16x128xf32> to vector<2x8x128xf32>
    %cst_18 = arith.constant dense<0.000000e+00> : vector<8x128xf32>
    %25 = vector.multi_reduction <add>, %24, %cst_18 [0] : vector<2x8x128xf32> to vector<8x128xf32>
    %26 = arith.addf %23, %25 : vector<8x128xf32>
    %c0_19 = arith.constant 0 : index
    %c0_20 = arith.constant 0 : index
    %27 = vector.load %arg6[%c0_19, %c0_20] : memref<8x128xf32, #tpu.memory_space<vmem>>, vector<8x128xf32>
    tpu.vector_store %arg6[%c0_19, %c0_20], %26 {strides = array<i32>} : memref<8x128xf32, #tpu.memory_space<vmem>>, vector<8x128xf32>,
    %c0_i32_21 = arith.constant 0 : i32
    %28 = arith.cmpi eq, %arg0, %c0_i32_21 : i32
    %29 = arith.extui %28 : i1 to i32
    %c0_i32_22 = arith.constant 0 : i32
    %30 = arith.cmpi ne, %29, %c0_i32_22 : i32
    scf.if %30 {
      %c0_23 = arith.constant 0 : index
      %c0_24 = arith.constant 0 : index
      %31 = vector.load %arg4[%c0_23, %c0_24] : memref<8x128xf32, #tpu.memory_space<vmem>>, vector<8x128xf32>
      %32 = vector.shape_cast %31 : vector<8x128xf32> to vector<1x8x128xf32>
      %cst_25 = arith.constant dense<0.000000e+00> : vector<1xf32>
      %33 = vector.multi_reduction <add>, %32, %cst_25 [1, 2] : vector<1x8x128xf32> to vector<1xf32>
      %34 = vector.shape_cast %33 : vector<1xf32> to vector<1x1x1xf32>
      %35 = vector.extract %34[0, 0, 0] : f32 from vector<1x1x1xf32>
      %c0_26 = arith.constant 0 : index
      %c0_27 = arith.constant 0 : index
      %36 = vector.load %arg5[%c0_26, %c0_27] : memref<8x128xf32, #tpu.memory_space<vmem>>, vector<8x128xf32>
      %37 = vector.shape_cast %36 : vector<8x128xf32> to vector<1x8x128xf32>
      %cst_28 = arith.constant dense<0.000000e+00> : vector<1xf32>
      %38 = vector.multi_reduction <add>, %37, %cst_28 [1, 2] : vector<1x8x128xf32> to vector<1xf32>
      %39 = vector.shape_cast %38 : vector<1xf32> to vector<1x1x1xf32>
      %40 = vector.extract %39[0, 0, 0] : f32 from vector<1x1x1xf32>
      %c0_29 = arith.constant 0 : index
      %c0_30 = arith.constant 0 : index
      %41 = vector.load %arg6[%c0_29, %c0_30] : memref<8x128xf32, #tpu.memory_space<vmem>>, vector<8x128xf32>
      %42 = vector.shape_cast %41 : vector<8x128xf32> to vector<1x8x128xf32>
      %cst_31 = arith.constant dense<0.000000e+00> : vector<1xf32>
      %43 = vector.multi_reduction <add>, %42, %cst_31 [1, 2] : vector<1x8x128xf32> to vector<1xf32>
      %44 = vector.shape_cast %43 : vector<1xf32> to vector<1x1x1xf32>
      %45 = vector.extract %44[0, 0, 0] : f32 from vector<1x1x1xf32>
      %cst_32 = arith.constant 2.000000e+00 : f32
      %46 = arith.mulf %cst_32, %35 : f32
      %cst_33 = arith.constant 9.99999974E-6 : f32
      %47 = arith.addf %46, %cst_33 : f32
      %48 = arith.addf %40, %45 : f32
      %cst_34 = arith.constant 9.99999974E-6 : f32
      %49 = arith.addf %48, %cst_34 : f32
      %50 = arith.divf %47, %49 : f32
      %cst_35 = arith.constant 1.000000e+00 : f32
      %51 = arith.subf %cst_35, %50 : f32
      %c0_36 = arith.constant 0 : index
      %52 = memref.load %arg3[%c0_36] : memref<1xf32, #tpu.memory_space<smem>>
      memref.store %51, %arg3[%c0_36] : memref<1xf32, #tpu.memory_space<smem>>
    } else {
    }
    return
  }
  func.func @transform_0(%arg0: i32) -> (i32, i32) {
    %c0_i32 = arith.constant 0 : i32
    %c0_i32_0 = arith.constant 0 : i32
    return %arg0, %c0_i32 : i32, i32
  }
  func.func @transform_1(%arg0: i32) -> (i32, i32) {
    %c0_i32 = arith.constant 0 : i32
    %c0_i32_0 = arith.constant 0 : i32
    return %arg0, %c0_i32 : i32, i32
  }
  func.func @transform_2(%arg0: i32) -> i32 {
    %c0_i32 = arith.constant 0 : i32
    %c0_i32_0 = arith.constant 0 : i32
    return %c0_i32 : i32
  }
}

</mosaic_0001>

<llo_original>
// kernel: tpu_custom_call.1
$region0: #{tpu_custom_call.1}
  #allocation0 [shape = 'u32[]', space=smem, size = 0x4, offset = 0x4, fixed_abs, tag = 'smem constant byte address 0x4 - core index']
  #allocation1 [shape = 'u32[144,128]{1,0:T(1,128)}', space=vmem, size = 0x12000, scoped, tag = 'internal scratch']
  #allocation2 [shape = 'f32[8,128]{1,0:T(8,128)}', space=vmem, size = 0x1000, scoped, tag = 'scratch operand']
  #allocation3 [shape = 'f32[8,128]{1,0:T(8,128)}', space=vmem, size = 0x1000, scoped, tag = 'scratch operand']
  #allocation4 [shape = 'f32[8,128]{1,0:T(8,128)}', space=vmem, size = 0x1000, scoped, tag = 'scratch operand']
  %s0 = inlined_call_operand.hbm [shape: f32[16,128], index: 0, kind: input, shape index: {}]
  %s1 = inlined_call_operand.hbm [shape: f32[16,128], index: 1, kind: input, shape index: {}]
  %s2 = inlined_call_operand.hbm [shape: f32[1], index: 2, kind: output, shape index: {}]
  %s3 = sld [smem:[#allocation0]]
  $region34: #{tpu_custom_call.1} parent=0
    _
  %s5 = ssub.s32 1, %s3
  %s6 = scalar_select 0, %s5, %s3
  $region1: #{tpu_custom_call.1} parent=0
    #allocation5 [shape = 'u8[8192]{0}', space=vmem, size = 0x2000, scoped, tag = 'input window, operand 0, single buffered']
    #allocation6 [shape = 's32[1]{0}', space=sflag, size = 0x4, scoped, tag = 'scoped memory for tpu_custom_call.1']
    #allocation7 [shape = 's32[1]{0}', space=sflag, size = 0x4, scoped, tag = 'scoped memory for tpu_custom_call.1']
    #allocation8 [shape = 'u8[8192]{0}', space=vmem, size = 0x2000, scoped, tag = 'input window, operand 1, single buffered']
    #allocation9 [shape = 's32[1]{0}', space=sflag, size = 0x4, scoped, tag = 'scoped memory for tpu_custom_call.1']
    #allocation10 [shape = 'u8[512]{0}', space=smem, size = 0x200, scoped, tag = 'output window, operand 0, single buffered']
    %7 = vsyncpa [#allocation6], 0
    %8 = vsyncpa [#allocation9], 0
    %9 = vsyncpa [#allocation7], 0
    // Predicated region
    $region2: #{tpu_custom_call.1} parent=1 // pred_check
      _
    $region3: #{tpu_custom_call.1} parent=1 // pred_check_branch
      %11 = sbr.rel (0) target = $region5
    $region4: #{tpu_custom_call.1} parent=1 // pred_region
      %s13 = ssub.s32 256, 256
      %14 = vsyncadd [#allocation6], %s13
      %s15 = sshll.u32 [#allocation5], 4
      %s16 = int_to_ptr.vmem [resolvable:$true] %s15
      %21 = dma.hbm_to_vmem [thread:$0]  %s0, 256, %s16, [#allocation6], 128, 128, 8
    $region5: #{tpu_custom_call.1} parent=1 // pred_fallthru
      _
    // Predicated region
    $region6: #{tpu_custom_call.1} parent=1 // pred_check
      _
    $region7: #{tpu_custom_call.1} parent=1 // pred_check_branch
      %23 = sbr.rel (0) target = $region9
    $region8: #{tpu_custom_call.1} parent=1 // pred_region
      %s25 = ssub.s32 256, 256
      %26 = vsyncadd [#allocation9], %s25
      %s27 = sshll.u32 [#allocation8], 4
      %s28 = int_to_ptr.vmem [resolvable:$true] %s27
      %33 = dma.hbm_to_vmem [thread:$0]  %s1, 256, %s28, [#allocation9], 128, 128, 8
    $region9: #{tpu_custom_call.1} parent=1 // pred_fallthru
      _
    // Predicated region
    $region10: #{tpu_custom_call.1} parent=1 // pred_check
      _
    $region11: #{tpu_custom_call.1} parent=1 // pred_check_branch
      %35 = sbr.rel (0) target = $region13
    $region12: #{tpu_custom_call.1} parent=1 // pred_region
      %36 = dma.done [#allocation6], 256
    $region13: #{tpu_custom_call.1} parent=1 // pred_fallthru
      _
    // Predicated region
    $region14: #{tpu_custom_call.1} parent=1 // pred_check
      _
    $region15: #{tpu_custom_call.1} parent=1 // pred_check_branch
      %38 = sbr.rel (0) target = $region17
    $region16: #{tpu_custom_call.1} parent=1 // pred_region
      %39 = dma.done [#allocation9], 256
    $region17: #{tpu_custom_call.1} parent=1 // pred_fallthru
      _
    %p40 = scmp.eq.s32.totalorder 0, 0
    // Predicated region
    $region18: #{tpu_custom_call.1} parent=1 // pred_check
      %p41 = pneg %p40
    $region19: #{tpu_custom_call.1} parent=1 // pred_check_branch
      %43 = sbr.rel (%p41) target = $region21
    $region20: #{tpu_custom_call.1} parent=1 // pred_region
      %44 = vst [vmem:[#allocation2] sm:$0xff] 0.0
      %45 = vst [vmem:[#allocation3] sm:$0xff] 0.0
      %46 = vst [vmem:[#allocation4] sm:$0xff] 0.0
    $region21: #{tpu_custom_call.1} parent=1 // pred_fallthru
      _
    %v47 = vld [vmem:[#allocation5] sm:$0xff]
    %v48 = vld [vmem:[#allocation5 + $0x8] sm:$0xff]
    %v49 = vld [vmem:[#allocation8] sm:$0xff]
    %v50 = vld [vmem:[#allocation8 + $0x8] sm:$0xff]
    %v51 = vmul.f32 %v47, 0.5
    %v52 = vmul.f32 %v48, 0.5
    %v53 = vtanh.pop %v51
    %v54 = vtanh.pop %v52
    %v55 = vmul.f32 %v53, 0.5
    %v56 = vmul.f32 %v54, 0.5
    %v57 = vadd.f32 %v55, 0.5
    %v58 = vadd.f32 %v56, 0.5
    %v59 = vld [vmem:[#allocation2] sm:$0xff]
    %v60 = vmul.f32 %v57, %v49
    %v61 = vmul.f32 %v58, %v50
    %v62 = vadd.f32 %v60, %v61
    %v63 = vadd.f32 %v59, %v62
    %64 = vst [vmem:[#allocation2] sm:$0xff] %v63
    %v65 = vld [vmem:[#allocation3] sm:$0xff]
    %v66 = vadd.f32 %v57, %v58
    %v67 = vadd.f32 %v65, %v66
    %68 = vst [vmem:[#allocation3] sm:$0xff] %v67
    %v69 = vld [vmem:[#allocation4] sm:$0xff]
    %v70 = vadd.f32 %v49, %v50
    %v71 = vadd.f32 %v69, %v70
    %72 = vst [vmem:[#allocation4] sm:$0xff] %v71
    // Predicated region
    $region22: #{tpu_custom_call.1} parent=1 // pred_check
      %p73 = pneg %p40
    $region23: #{tpu_custom_call.1} parent=1 // pred_check_branch
      %75 = sbr.rel (%p73) target = $region25
    $region24: #{tpu_custom_call.1} parent=1 // pred_region
      %v76 = vld [vmem:[#allocation2] sm:$0xff]
      %77 = vadd.xlane.f32.xlu0 %v76
      %v78 = vpop.xlane.xlu0 %77
      %v79 = vrot.slane %v78, 4
      %v80 = vadd.f32 %v78, %v79
      %v81 = vrot.slane %v80, 2
      %v82 = vadd.f32 %v80, %v81
      %v83 = vrot.slane %v82, 1
      %v84 = vadd.f32 %v82, %v83
      %s85 = vtos %v84
      %v86 = vld [vmem:[#allocation3] sm:$0xff]
      %87 = vadd.xlane.f32.xlu0 %v86
      %v88 = vpop.xlane.xlu0 %87
      %v89 = vrot.slane %v88, 4
      %v90 = vadd.f32 %v88, %v89
      %v91 = vrot.slane %v90, 2
      %v92 = vadd.f32 %v90, %v91
      %v93 = vrot.slane %v92, 1
      %v94 = vadd.f32 %v92, %v93
      %s95 = vtos %v94
      %v96 = vld [vmem:[#allocation4] sm:$0xff]
      %97 = vadd.xlane.f32.xlu0 %v96
      %v98 = vpop.xlane.xlu0 %97
      %v99 = vrot.slane %v98, 4
      %v100 = vadd.f32 %v98, %v99
      %v101 = vrot.slane %v100, 2
      %v102 = vadd.f32 %v100, %v101
      %v103 = vrot.slane %v102, 1
      %v104 = vadd.f32 %v102, %v103
      %s105 = vtos %v104
      %s106 = smul.f32 %s85, 2.0
      %s107 = sadd.f32 %s106, 1e-05
      %s108 = sadd.f32 %s95, %s105
      %s109 = sadd.f32 %s108, 1e-05
      %v110 = vstv %s109
      %v111 = vrcp.pop %v110
      %s112 = vtos %v111
      %s113 = smul.f32 %s107, %s112
      %s114 = ssub.f32 1.0, %s113
      %s115 = scalar_lea.smem [#allocation10], 0
      %116 = sst [smem:[%s115]] %s114
    $region25: #{tpu_custom_call.1} parent=1 // pred_fallthru
      _
    // Predicated region
    $region26: #{tpu_custom_call.1} parent=1 // pred_check
      _
    $region27: #{tpu_custom_call.1} parent=1 // pred_check_branch
      %118 = sbr.rel (0) target = $region29
    $region28: #{tpu_custom_call.1} parent=1 // pred_region
      %s120 = ssub.s32 16, 16
      %121 = vsyncadd [#allocation7], %s120
      %124 = dma.smem_to_hbm [#allocation10], 16, %s2, [#allocation7]
    $region29: #{tpu_custom_call.1} parent=1 // pred_fallthru
      _
    // Predicated region
    $region30: #{tpu_custom_call.1} parent=1 // pred_check
      _
    $region31: #{tpu_custom_call.1} parent=1 // pred_check_branch
      %126 = sbr.rel (0) target = $region33
    $region32: #{tpu_custom_call.1} parent=1 // pred_region
      %127 = dma.done [#allocation7], 16
    $region33: #{tpu_custom_call.1} parent=1 // pred_fallthru
      _
    %128 = sfence
    %129 = vsyncpa [#allocation6], 1
    %130 = vsyncpa [#allocation9], 1
    %131 = vsyncpa [#allocation7], 1

</llo_original>
